<compile_context>
chip_gen: v7x
topology: tpu7x:2x2x1
jax: 0.10.0
libtpu: 0.0.40
codegen_flags: <defaults>
</compile_context>

<pallas_src>
import functools

import jax
import jax.numpy as jnp
from jax.experimental import pallas as pl
from jax.experimental.pallas import tpu as pltpu


def _round_up(n: int, m: int) -> int:
    return ((n + m - 1) // m) * m


def _pick_batch_tile(batch: int, *, target_tile: int = 2048, min_steps: int = 4):
    """Pick (tm, b_pad): tm multiple of 16 (bf16 sublane packing), b_pad % tm == 0.

    Large batches: tm = target_tile (per-step work >> per-step overhead) while keeping
    >= min_steps grid steps (>= 2 per TensorCore on a 2-TC chip).  Small batches: one step.
    """
    b16 = _round_up(batch, 16)
    if b16 >= min_steps * target_tile:
        tm = target_tile
    elif b16 >= min_steps * 256:
        tm = _round_up(-(-b16 // min_steps), 16)   # ceil(b16 / min_steps), 16-aligned
    else:
        tm = b16                                    # single grid step
    b_pad = _round_up(b16, tm)
    return tm, b_pad


def _mlp_kernel(*refs, num_relu_layers: int, enforce_unit_quat: bool, output_dim: int):
    """refs = (x, w0, b0, w1, b1, ..., w_out, b_out, o).

    x: bf16 [TM, input_dim] (un-padded feature dim); weights: bf16 [fan_in(_p), fan_out_p];
    biases: f32 [1, fan_out_p]; o: bf16 [TM, out_p].  All matmuls accumulate in f32 (MXU).
    """
    x_ref = refs[0]
    o_ref = refs[-1]
    p = refs[1:-1]

    h = x_ref[...]  # bf16
    for li in range(num_relu_layers):
        w = p[2 * li][...]
        b = p[2 * li + 1][...]
        acc = jnp.dot(h, w, preferred_element_type=jnp.float32) + b
        # Dropout skipped (eval semantics), then ReLU; back to bf16 for the next MXU pass.
        h = jnp.maximum(acc, 0.0).astype(jnp.bfloat16)

    w = p[2 * num_relu_layers][...]
    b = p[2 * num_relu_layers + 1][...]
    out = jnp.tanh(jnp.dot(h, w, preferred_element_type=jnp.float32) + b)

    if enforce_unit_quat:
        # output[:, 3:output_dim] = F.normalize(output[:, 3:output_dim], dim=1), eps=1e-12.
        col = jax.lax.broadcasted_iota(jnp.int32, out.shape, 1)
        quat_mask = (col >= 3) & (col < output_dim)
        quat = jnp.where(quat_mask, out, 0.0)
        sumsq = jnp.sum(quat * quat, axis=1, keepdims=True)
        inv_norm = jax.lax.rsqrt(jnp.maximum(sumsq, 1e-24))  # == 1 / max(||quat||, 1e-12)
        out = jnp.where(quat_mask, out * inv_norm, out)

    o_ref[...] = out.astype(o_ref.dtype)  # bf16, lane-dense (out_p == 128)


def vision_imitation_forward(x, params, *, num_hidden_layers: int,
                             enforce_unit_quat: bool = False):
    """Eval-mode forward of VisionImitationModel.

    x: f32 [B, input_dim]; params: flat list [w_in, b_in, ..., w_out, b_out] with each weight
    stored as [fan_in, fan_out] (pre-transposed vs. torch nn.Linear) and each bias as
    [1, fan_out] or [fan_out].  Dropout is treated as identity (eval mode).  Returns f32.
    """
    batch, input_dim = x.shape
    assert len(params) == 2 * (num_hidden_layers + 1), "expected (W, b) per linear layer"
    output_dim = params[-1].shape[-1]
    if enforce_unit_quat:
        assert output_dim > 3, "enforce_unit_quat requires output_dim > 3 (xyz + quaternion)"

    # Feature dims: keep input_dim un-padded (full-array block exception); pad hidden/output
    # feature dims to 128 lanes so activations and the output store are lane-dense.
    dims = [input_dim] + [params[2 * i].shape[-1] for i in range(num_hidden_layers + 1)]
    pdims = [input_dim] + [_round_up(d, 128) for d in dims[1:]]
    in_p, out_p = pdims[0], pdims[-1]

    tm, b_pad = _pick_batch_tile(batch)

    x_p = (jnp.zeros((b_pad, in_p), jnp.bfloat16)
           .at[:batch, :].set(x.astype(jnp.bfloat16)))

    padded_params = []
    flops = 0
    weight_bytes = 0
    for li in range(num_hidden_layers + 1):
        w = params[2 * li]
        b = jnp.reshape(params[2 * li + 1], (1, -1))
        fi, fo = w.shape
        fpi, fpo = pdims[li], pdims[li + 1]
        w_p = jnp.zeros((fpi, fpo), jnp.bfloat16).at[:fi, :fo].set(w.astype(jnp.bfloat16))
        b_p = jnp.zeros((1, fpo), jnp.float32).at[:, :fo].set(b.astype(jnp.float32))
        padded_params.extend([w_p, b_p])
        flops += 2 * b_pad * fpi * fpo
        weight_bytes += w_p.size * 2 + b_p.size * 4

    # Grid / specs: tile the batch; weights/biases resident across all grid steps.
    grid = (b_pad // tm,)
    in_specs = [pl.BlockSpec((tm, in_p), lambda i: (i, 0))]
    for arr in padded_params:
        in_specs.append(pl.BlockSpec(arr.shape, lambda i: (0, 0)))
    out_specs = pl.BlockSpec((tm, out_p), lambda i: (i, 0))

    kernel = functools.partial(
        _mlp_kernel,
        num_relu_layers=num_hidden_layers,
        enforce_unit_quat=enforce_unit_quat,
        output_dim=output_dim,
    )

    # VMEM budget: double-buffered x/out tiles + (conservatively doubled) resident weights,
    # with headroom; >= 32 MiB (covers the small v5e scoped default), <= 64 MiB (v7x physical).
    io_tile_bytes = 2 * (tm * in_p * 2 + tm * out_p * 2)
    vmem_limit = int(min(max(io_tile_bytes + 2 * weight_bytes + (8 << 20), 32 << 20), 64 << 20))

    # Advisory cost: weights counted once; x and out streams at their true (un-inflated) sizes.
    cost = pl.CostEstimate(
        flops=flops,
        transcendentals=b_pad * out_p,  # tanh on the output tile
        bytes_accessed=x_p.size * 2 + b_pad * out_p * 2 + weight_bytes,
    )

    out_padded = pl.pallas_call(
        kernel,
        out_shape=jax.ShapeDtypeStruct((b_pad, out_p), jnp.bfloat16),
        grid_spec=pltpu.PrefetchScalarGridSpec(
            num_scalar_prefetch=0,
            grid=grid,
            in_specs=in_specs,
            out_specs=out_specs,
        ),
        compiler_params=pltpu.CompilerParams(
            dimension_semantics=("parallel",),
            vmem_limit_bytes=vmem_limit,
        ),
        cost_estimate=cost,
    )(x_p, *padded_params)

    return out_padded[:batch, :output_dim].astype(jnp.float32)


def init_params(key, input_dim, output_dim, hidden_dim, num_hidden_layers):
    """PyTorch-style init U(-1/sqrt(fan_in), 1/sqrt(fan_in)); W stored as [fan_in, fan_out]."""
    dims = [input_dim] + [hidden_dim] * num_hidden_layers + [output_dim]
    params = []
    for fan_in, fan_out in zip(dims[:-1], dims[1:]):
        key, kw, kb = jax.random.split(key, 3)
        bound = 1.0 / jnp.sqrt(float(fan_in))
        w = jax.random.uniform(kw, (fan_in, fan_out), jnp.float32, -bound, bound)
        b = jax.random.uniform(kb, (1, fan_out), jnp.float32, -bound, bound)
        params.extend([w, b])
    return params


def reference_forward(x, params, num_hidden_layers, enforce_unit_quat=False):
    """Plain-JAX reference mirroring the kernel numerics (bf16 weights/activations, f32
    accumulation, bf16 output store)."""
    h = x.astype(jnp.bfloat16)
    for li in range(num_hidden_layers):
        acc = jnp.dot(h, params[2 * li].astype(jnp.bfloat16),
                      preferred_element_type=jnp.float32) + params[2 * li + 1]
        h = jnp.maximum(acc, 0.0).astype(jnp.bfloat16)
    out = jnp.tanh(jnp.dot(h, params[2 * num_hidden_layers].astype(jnp.bfloat16),
                           preferred_element_type=jnp.float32) + params[2 * num_hidden_layers + 1])
    if enforce_unit_quat:
        quat = out[:, 3:]
        norm = jnp.maximum(jnp.linalg.norm(quat, axis=1, keepdims=True), 1e-12)
        out = jnp.concatenate([out[:, :3], quat / norm], axis=1)
    return out.astype(jnp.bfloat16).astype(jnp.float32)


if __name__ == "__main__":
    # Small shapes consistent with the module: flat feature vector in, pose (xyz + quat) out.
    input_dim = 16
    output_dim = 7
    hidden_dim = 32
    num_hidden_layers = 3
    batch = 2

    key = jax.random.PRNGKey(0)
    key, kx = jax.random.split(key)
    x = jax.random.normal(kx, (batch, input_dim), jnp.float32)
    params = init_params(key, input_dim, output_dim, hidden_dim, num_hidden_layers)

    # Default path (enforce_unit_quat=False).
    out = vision_imitation_forward(x, params, num_hidden_layers=num_hidden_layers,
                                   enforce_unit_quat=False)
    out = jax.block_until_ready(out)
    ref = reference_forward(x, params, num_hidden_layers, enforce_unit_quat=False)
    assert out.shape == (batch, output_dim), out.shape
    assert jnp.allclose(out, ref, atol=2e-3, rtol=2e-3), "mismatch vs reference (no quat)"

    # Quaternion-normalized path.
    out_q = vision_imitation_forward(x, params, num_hidden_layers=num_hidden_layers,
                                     enforce_unit_quat=True)
    out_q = jax.block_until_ready(out_q)
    ref_q = reference_forward(x, params, num_hidden_layers, enforce_unit_quat=True)
    assert out_q.shape == (batch, output_dim), out_q.shape
    assert jnp.allclose(out_q, ref_q, atol=2e-3, rtol=2e-3), "mismatch vs reference (quat)"

    print("KERNEL_OK")
</pallas_src>

<mosaic_0001>
module attributes {stable_mosaic.version = 11 : i64} {
  func.func @_mlp_kernel(%arg0: i32, %arg1: memref<16x16xbf16, #tpu.memory_space<vmem>>, %arg2: memref<16x128xbf16, #tpu.memory_space<vmem>>, %arg3: memref<1x128xf32, #tpu.memory_space<vmem>>, %arg4: memref<128x128xbf16, #tpu.memory_space<vmem>>, %arg5: memref<1x128xf32, #tpu.memory_space<vmem>>, %arg6: memref<128x128xbf16, #tpu.memory_space<vmem>>, %arg7: memref<1x128xf32, #tpu.memory_space<vmem>>, %arg8: memref<128x128xbf16, #tpu.memory_space<vmem>>, %arg9: memref<1x128xf32, #tpu.memory_space<vmem>>, %arg10: memref<16x128xbf16, #tpu.memory_space<vmem>>) attributes {dimension_semantics = [#tpu.dimension_semantics<parallel>], iteration_bounds = array<i64: 1>, scalar_prefetch = 0 : i64, scratch_operands = 0 : i64, tpu.core_type = #tpu.core_type<tc>, window_params = [{transform_indices = @transform_0, window_bounds = array<i64: 16, 16>}, {pipeline_mode = #tpu.pipeline_mode<synchronous>, transform_indices = @transform_1, window_bounds = array<i64: 16, 128>}, {pipeline_mode = #tpu.pipeline_mode<synchronous>, transform_indices = @transform_2, window_bounds = array<i64: 1, 128>}, {pipeline_mode = #tpu.pipeline_mode<synchronous>, transform_indices = @transform_3, window_bounds = array<i64: 128, 128>}, {pipeline_mode = #tpu.pipeline_mode<synchronous>, transform_indices = @transform_4, window_bounds = array<i64: 1, 128>}, {pipeline_mode = #tpu.pipeline_mode<synchronous>, transform_indices = @transform_5, window_bounds = array<i64: 128, 128>}, {pipeline_mode = #tpu.pipeline_mode<synchronous>, transform_indices = @transform_6, window_bounds = array<i64: 1, 128>}, {pipeline_mode = #tpu.pipeline_mode<synchronous>, transform_indices = @transform_7, window_bounds = array<i64: 128, 128>}, {pipeline_mode = #tpu.pipeline_mode<synchronous>, transform_indices = @transform_8, window_bounds = array<i64: 1, 128>}, {transform_indices = @transform_9, window_bounds = array<i64: 16, 128>}]} {
    %c0 = arith.constant 0 : index
    %c0_0 = arith.constant 0 : index
    %0 = vector.load %arg1[%c0, %c0_0] : memref<16x16xbf16, #tpu.memory_space<vmem>>, vector<16x16xbf16>
    %c0_1 = arith.constant 0 : index
    %c0_2 = arith.constant 0 : index
    %1 = vector.load %arg2[%c0_1, %c0_2] : memref<16x128xbf16, #tpu.memory_space<vmem>>, vector<16x128xbf16>
    %c0_3 = arith.constant 0 : index
    %c0_4 = arith.constant 0 : index
    %2 = vector.load %arg3[%c0_3, %c0_4] : memref<1x128xf32, #tpu.memory_space<vmem>>, vector<1x128xf32>
    %cst = arith.constant dense<0.000000e+00> : vector<16x128xf32>
    %3 = tpu.matmul %0, %1, %cst {dimension_numbers = #tpu.dot_dimension_numbers<[1], [0], [0], [1], [0, 0, 1, 1], [], []>} : vector<16x16xbf16>, vector<16x128xbf16>, vector<16x128xf32> -> vector<16x128xf32>
    %4 = vector.broadcast %2 : vector<1x128xf32> to vector<16x128xf32>
    %5 = arith.addf %3, %4 : vector<16x128xf32>
    %cst_5 = arith.constant 0.000000e+00 : f32
    %6 = vector.broadcast %cst_5 : f32 to vector<16x128xf32>
    %7 = arith.maximumf %5, %6 : vector<16x128xf32>
    %8 = arith.truncf %7 : vector<16x128xf32> to vector<16x128xbf16>
    %c0_6 = arith.constant 0 : index
    %c0_7 = arith.constant 0 : index
    %9 = vector.load %arg4[%c0_6, %c0_7] : memref<128x128xbf16, #tpu.memory_space<vmem>>, vector<128x128xbf16>
    %c0_8 = arith.constant 0 : index
    %c0_9 = arith.constant 0 : index
    %10 = vector.load %arg5[%c0_8, %c0_9] : memref<1x128xf32, #tpu.memory_space<vmem>>, vector<1x128xf32>
    %cst_10 = arith.constant dense<0.000000e+00> : vector<16x128xf32>
    %11 = tpu.matmul %8, %9, %cst_10 {dimension_numbers = #tpu.dot_dimension_numbers<[1], [0], [0], [1], [0, 0, 1, 1], [], []>} : vector<16x128xbf16>, vector<128x128xbf16>, vector<16x128xf32> -> vector<16x128xf32>
    %12 = vector.broadcast %10 : vector<1x128xf32> to vector<16x128xf32>
    %13 = arith.addf %11, %12 : vector<16x128xf32>
    %cst_11 = arith.constant 0.000000e+00 : f32
    %14 = vector.broadcast %cst_11 : f32 to vector<16x128xf32>
    %15 = arith.maximumf %13, %14 : vector<16x128xf32>
    %16 = arith.truncf %15 : vector<16x128xf32> to vector<16x128xbf16>
    %c0_12 = arith.constant 0 : index
    %c0_13 = arith.constant 0 : index
    %17 = vector.load %arg6[%c0_12, %c0_13] : memref<128x128xbf16, #tpu.memory_space<vmem>>, vector<128x128xbf16>
    %c0_14 = arith.constant 0 : index
    %c0_15 = arith.constant 0 : index
    %18 = vector.load %arg7[%c0_14, %c0_15] : memref<1x128xf32, #tpu.memory_space<vmem>>, vector<1x128xf32>
    %cst_16 = arith.constant dense<0.000000e+00> : vector<16x128xf32>
    %19 = tpu.matmul %16, %17, %cst_16 {dimension_numbers = #tpu.dot_dimension_numbers<[1], [0], [0], [1], [0, 0, 1, 1], [], []>} : vector<16x128xbf16>, vector<128x128xbf16>, vector<16x128xf32> -> vector<16x128xf32>
    %20 = vector.broadcast %18 : vector<1x128xf32> to vector<16x128xf32>
    %21 = arith.addf %19, %20 : vector<16x128xf32>
    %cst_17 = arith.constant 0.000000e+00 : f32
    %22 = vector.broadcast %cst_17 : f32 to vector<16x128xf32>
    %23 = arith.maximumf %21, %22 : vector<16x128xf32>
    %24 = arith.truncf %23 : vector<16x128xf32> to vector<16x128xbf16>
    %c0_18 = arith.constant 0 : index
    %c0_19 = arith.constant 0 : index
    %25 = vector.load %arg8[%c0_18, %c0_19] : memref<128x128xbf16, #tpu.memory_space<vmem>>, vector<128x128xbf16>
    %c0_20 = arith.constant 0 : index
    %c0_21 = arith.constant 0 : index
    %26 = vector.load %arg9[%c0_20, %c0_21] : memref<1x128xf32, #tpu.memory_space<vmem>>, vector<1x128xf32>
    %cst_22 = arith.constant dense<0.000000e+00> : vector<16x128xf32>
    %27 = tpu.matmul %24, %25, %cst_22 {dimension_numbers = #tpu.dot_dimension_numbers<[1], [0], [0], [1], [0, 0, 1, 1], [], []>} : vector<16x128xbf16>, vector<128x128xbf16>, vector<16x128xf32> -> vector<16x128xf32>
    %28 = vector.broadcast %26 : vector<1x128xf32> to vector<16x128xf32>
    %29 = arith.addf %27, %28 : vector<16x128xf32>
    %30 = math.tanh %29 : vector<16x128xf32>
    %31 = arith.truncf %30 : vector<16x128xf32> to vector<16x128xbf16>
    %c0_23 = arith.constant 0 : index
    %c0_24 = arith.constant 0 : index
    %32 = vector.load %arg10[%c0_23, %c0_24] : memref<16x128xbf16, #tpu.memory_space<vmem>>, vector<16x128xbf16>
    tpu.vector_store %arg10[%c0_23, %c0_24], %31 {strides = array<i32>} : memref<16x128xbf16, #tpu.memory_space<vmem>>, vector<16x128xbf16>,
    return
  }
  func.func @transform_0(%arg0: i32) -> (i32, i32) {
    %c0_i32 = arith.constant 0 : i32
    %c0_i32_0 = arith.constant 0 : i32
    return %arg0, %c0_i32 : i32, i32
  }
  func.func @transform_1(%arg0: i32) -> (i32, i32) {
    %c0_i32 = arith.constant 0 : i32
    %c0_i32_0 = arith.constant 0 : i32
    %c0_i32_1 = arith.constant 0 : i32
    return %c0_i32, %c0_i32_0 : i32, i32
  }
  func.func @transform_2(%arg0: i32) -> (i32, i32) {
    %c0_i32 = arith.constant 0 : i32
    %c0_i32_0 = arith.constant 0 : i32
    %c0_i32_1 = arith.constant 0 : i32
    return %c0_i32, %c0_i32_0 : i32, i32
  }
  func.func @transform_3(%arg0: i32) -> (i32, i32) {
    %c0_i32 = arith.constant 0 : i32
    %c0_i32_0 = arith.constant 0 : i32
    %c0_i32_1 = arith.constant 0 : i32
    return %c0_i32, %c0_i32_0 : i32, i32
  }
  func.func @transform_4(%arg0: i32) -> (i32, i32) {
    %c0_i32 = arith.constant 0 : i32
    %c0_i32_0 = arith.constant 0 : i32
    %c0_i32_1 = arith.constant 0 : i32
    return %c0_i32, %c0_i32_0 : i32, i32
  }
  func.func @transform_5(%arg0: i32) -> (i32, i32) {
    %c0_i32 = arith.constant 0 : i32
    %c0_i32_0 = arith.constant 0 : i32
    %c0_i32_1 = arith.constant 0 : i32
    return %c0_i32, %c0_i32_0 : i32, i32
  }
  func.func @transform_6(%arg0: i32) -> (i32, i32) {
    %c0_i32 = arith.constant 0 : i32
    %c0_i32_0 = arith.constant 0 : i32
    %c0_i32_1 = arith.constant 0 : i32
    return %c0_i32, %c0_i32_0 : i32, i32
  }
  func.func @transform_7(%arg0: i32) -> (i32, i32) {
    %c0_i32 = arith.constant 0 : i32
    %c0_i32_0 = arith.constant 0 : i32
    %c0_i32_1 = arith.constant 0 : i32
    return %c0_i32, %c0_i32_0 : i32, i32
  }
  func.func @transform_8(%arg0: i32) -> (i32, i32) {
    %c0_i32 = arith.constant 0 : i32
    %c0_i32_0 = arith.constant 0 : i32
    %c0_i32_1 = arith.constant 0 : i32
    return %c0_i32, %c0_i32_0 : i32, i32
  }
  func.func @transform_9(%arg0: i32) -> (i32, i32) {
    %c0_i32 = arith.constant 0 : i32
    %c0_i32_0 = arith.constant 0 : i32
    return %arg0, %c0_i32 : i32, i32
  }
}

</mosaic_0001>

<llo_original>
// kernel: tpu_custom_call.1
$region0: #{tpu_custom_call.1}
  #allocation0 [shape = 'u32[]', space=smem, size = 0x4, offset = 0x4, fixed_abs, tag = 'smem constant byte address 0x4 - core index']
  #allocation1 [shape = 'u32[144,128]{1,0:T(1,128)}', space=vmem, size = 0x12000, scoped, tag = 'internal scratch']
  %s0 = inlined_call_operand.hbm [shape: bf16[16,16], index: 0, kind: input, shape index: {}]
  %s1 = inlined_call_operand.hbm [shape: bf16[16,128], index: 1, kind: input, shape index: {}]
  %s2 = inlined_call_operand.vmem [shape: f32[1,128], index: 2, kind: input, shape index: {}]
  %s3 = inlined_call_operand.hbm [shape: bf16[128,128], index: 3, kind: input, shape index: {}]
  %s4 = inlined_call_operand.vmem [shape: f32[1,128], index: 4, kind: input, shape index: {}]
  %s5 = inlined_call_operand.hbm [shape: bf16[128,128], index: 5, kind: input, shape index: {}]
  %s6 = inlined_call_operand.vmem [shape: f32[1,128], index: 6, kind: input, shape index: {}]
  %s7 = inlined_call_operand.hbm [shape: bf16[128,128], index: 7, kind: input, shape index: {}]
  %s8 = inlined_call_operand.vmem [shape: f32[1,128], index: 8, kind: input, shape index: {}]
  %s9 = inlined_call_operand.hbm [shape: bf16[16,128], index: 9, kind: output, shape index: {}]
  %s10 = sld [smem:[#allocation0]]
  $region66: #{tpu_custom_call.1} parent=0
    _
  %s12 = ssub.s32 1, %s10
  %s13 = scalar_select 0, %s12, %s10
  $region1: #{tpu_custom_call.1} parent=0
    #allocation2 [shape = 'u8[4096]{0}', space=vmem, size = 0x1000, scoped, tag = 'input window, operand 0, single buffered']
    #allocation3 [shape = 's32[1]{0}', space=sflag, size = 0x4, scoped, tag = 'scoped memory for tpu_custom_call.1']
    #allocation4 [shape = 's32[1]{0}', space=sflag, size = 0x4, scoped, tag = 'scoped memory for tpu_custom_call.1']
    #allocation5 [shape = 'u8[4096]{0}', space=vmem, size = 0x1000, scoped, tag = 'input window, operand 1, single buffered']
    #allocation6 [shape = 's32[1]{0}', space=sflag, size = 0x4, scoped, tag = 'scoped memory for tpu_custom_call.1']
    #allocation7 [shape = 'u8[32768]{0}', space=vmem, size = 0x8000, scoped, tag = 'input window, operand 3, single buffered']
    #allocation8 [shape = 'u8[32768]{0}', space=vmem, size = 0x8000, scoped, tag = 'input window, operand 5, single buffered']
    #allocation9 [shape = 's32[1]{0}', space=sflag, size = 0x4, scoped, tag = 'scoped memory for tpu_custom_call.1']
    #allocation10 [shape = 'u8[32768]{0}', space=vmem, size = 0x8000, scoped, tag = 'input window, operand 7, single buffered']
    #allocation11 [shape = 'u8[4096]{0}', space=vmem, size = 0x1000, scoped, tag = 'output window, operand 0, single buffered']
    %14 = vsyncpa [#allocation3], 0
    %15 = vsyncpa [#allocation6], 0
    %16 = vsyncpa [#allocation9], 0
    %17 = vsyncpa [#allocation4], 0
    // Predicated region
    $region2: #{tpu_custom_call.1} parent=1 // pred_check
      _
    $region3: #{tpu_custom_call.1} parent=1 // pred_check_branch
      %19 = sbr.rel (0) target = $region5
    $region4: #{tpu_custom_call.1} parent=1 // pred_region
      %s21 = ssub.s32 128, 128
      %22 = vsyncadd [#allocation3], %s21
      %s23 = sshll.u32 [#allocation2], 4
      %s24 = int_to_ptr.vmem [resolvable:$true] %s23
      %29 = dma.hbm_to_vmem [thread:$0]  %s0, 128, %s24, [#allocation3], 64, 64, 4
    $region5: #{tpu_custom_call.1} parent=1 // pred_fallthru
      _
    // Predicated region
    $region6: #{tpu_custom_call.1} parent=1 // pred_check
      _
    $region7: #{tpu_custom_call.1} parent=1 // pred_check_branch
      %31 = sbr.rel (0) target = $region9
    $region8: #{tpu_custom_call.1} parent=1 // pred_region
      %s33 = ssub.s32 128, 128
      %34 = vsyncadd [#allocation6], %s33
      %s35 = sshll.u32 [#allocation5], 4
      %s36 = int_to_ptr.vmem [resolvable:$true] %s35
      %41 = dma.hbm_to_vmem [thread:$0]  %s1, 128, %s36, [#allocation6], 64, 64, 4
    $region9: #{tpu_custom_call.1} parent=1 // pred_fallthru
      _
    // Predicated region
    $region10: #{tpu_custom_call.1} parent=1 // pred_check
      _
    $region11: #{tpu_custom_call.1} parent=1 // pred_check_branch
      %43 = sbr.rel (0) target = $region13
    $region12: #{tpu_custom_call.1} parent=1 // pred_region
      _
    $region13: #{tpu_custom_call.1} parent=1 // pred_fallthru
      _
    // Predicated region
    $region14: #{tpu_custom_call.1} parent=1 // pred_check
      _
    $region15: #{tpu_custom_call.1} parent=1 // pred_check_branch
      %45 = sbr.rel (0) target = $region17
    $region16: #{tpu_custom_call.1} parent=1 // pred_region
      %s47 = ssub.s32 1024, 1024
      %48 = vsyncadd [#allocation6], %s47
      %s49 = sshll.u32 [#allocation7], 4
      %s50 = int_to_ptr.vmem [resolvable:$true] %s49
      %55 = dma.hbm_to_vmem [thread:$0]  %s3, 1024, %s50, [#allocation6], 64, 64, 4
    $region17: #{tpu_custom_call.1} parent=1 // pred_fallthru
      _
    // Predicated region
    $region18: #{tpu_custom_call.1} parent=1 // pred_check
      _
    $region19: #{tpu_custom_call.1} parent=1 // pred_check_branch
      %57 = sbr.rel (0) target = $region21
    $region20: #{tpu_custom_call.1} parent=1 // pred_region
      _
    $region21: #{tpu_custom_call.1} parent=1 // pred_fallthru
      _
    // Predicated region
    $region22: #{tpu_custom_call.1} parent=1 // pred_check
      _
    $region23: #{tpu_custom_call.1} parent=1 // pred_check_branch
      %59 = sbr.rel (0) target = $region25
    $region24: #{tpu_custom_call.1} parent=1 // pred_region
      %s61 = ssub.s32 1024, 1024
      %62 = vsyncadd [#allocation9], %s61
      %s63 = sshll.u32 [#allocation8], 4
      %s64 = int_to_ptr.vmem [resolvable:$true] %s63
      %69 = dma.hbm_to_vmem [thread:$0]  %s5, 1024, %s64, [#allocation9], 64, 64, 4
    $region25: #{tpu_custom_call.1} parent=1 // pred_fallthru
      _
    // Predicated region
    $region26: #{tpu_custom_call.1} parent=1 // pred_check
      _
    $region27: #{tpu_custom_call.1} parent=1 // pred_check_branch
      %71 = sbr.rel (0) target = $region29
    $region28: #{tpu_custom_call.1} parent=1 // pred_region
      _
    $region29: #{tpu_custom_call.1} parent=1 // pred_fallthru
      _
    // Predicated region
    $region30: #{tpu_custom_call.1} parent=1 // pred_check
      _
    $region31: #{tpu_custom_call.1} parent=1 // pred_check_branch
      %73 = sbr.rel (0) target = $region33
    $region32: #{tpu_custom_call.1} parent=1 // pred_region
      %s75 = ssub.s32 1024, 1024
      %76 = vsyncadd [#allocation9], %s75
      %s77 = sshll.u32 [#allocation10], 4
      %s78 = int_to_ptr.vmem [resolvable:$true] %s77
      %83 = dma.hbm_to_vmem [thread:$0]  %s7, 1024, %s78, [#allocation9], 64, 64, 4
    $region33: #{tpu_custom_call.1} parent=1 // pred_fallthru
      _
    // Predicated region
    $region34: #{tpu_custom_call.1} parent=1 // pred_check
      _
    $region35: #{tpu_custom_call.1} parent=1 // pred_check_branch
      %85 = sbr.rel (0) target = $region37
    $region36: #{tpu_custom_call.1} parent=1 // pred_region
      _
    $region37: #{tpu_custom_call.1} parent=1 // pred_fallthru
      _
    // Predicated region
    $region38: #{tpu_custom_call.1} parent=1 // pred_check
      _
    $region39: #{tpu_custom_call.1} parent=1 // pred_check_branch
      %87 = sbr.rel (0) target = $region41
    $region40: #{tpu_custom_call.1} parent=1 // pred_region
      %88 = dma.done [#allocation3], 128
    $region41: #{tpu_custom_call.1} parent=1 // pred_fallthru
      _
    // Predicated region
    $region42: #{tpu_custom_call.1} parent=1 // pred_check
      _
    $region43: #{tpu_custom_call.1} parent=1 // pred_check_branch
      %90 = sbr.rel (0) target = $region45
    $region44: #{tpu_custom_call.1} parent=1 // pred_region
      %91 = dma.done [#allocation6], 128
    $region45: #{tpu_custom_call.1} parent=1 // pred_fallthru
      _
    // Predicated region
    $region46: #{tpu_custom_call.1} parent=1 // pred_check
      _
    $region47: #{tpu_custom_call.1} parent=1 // pred_check_branch
      %93 = sbr.rel (0) target = $region49
    $region48: #{tpu_custom_call.1} parent=1 // pred_region
      %94 = dma.done [#allocation6], 1024
    $region49: #{tpu_custom_call.1} parent=1 // pred_fallthru
      _
    // Predicated region
    $region50: #{tpu_custom_call.1} parent=1 // pred_check
      _
    $region51: #{tpu_custom_call.1} parent=1 // pred_check_branch
      %96 = sbr.rel (0) target = $region53
    $region52: #{tpu_custom_call.1} parent=1 // pred_region
      %97 = dma.done [#allocation9], 1024
    $region53: #{tpu_custom_call.1} parent=1 // pred_fallthru
      _
    // Predicated region
    $region54: #{tpu_custom_call.1} parent=1 // pred_check
      _
    $region55: #{tpu_custom_call.1} parent=1 // pred_check_branch
      %99 = sbr.rel (0) target = $region57
    $region56: #{tpu_custom_call.1} parent=1 // pred_region
      %100 = dma.done [#allocation9], 1024
    $region57: #{tpu_custom_call.1} parent=1 // pred_fallthru
      _
    %v102 = vld [vmem:[#allocation2] sm:$0xf]
    %v103 = vld [vmem:[#allocation2 + $0x4] sm:$0xf]
    %v104 = vld [vmem:[#allocation5] sm:$0xf]
    %v105 = vld [vmem:[#allocation5 + $0x4] sm:$0xf]
    %v106 = vld [vmem:[%s2] sm:$0x1]
    %v108 = vlaneseq
    %v109 = vshrl.u32 %v108, 7
    %v110 = vsub.s32 0, %v109
    %v111 = vrot.slane %v106, %v110
    %v115 = vunpack.c.l.b16 %v102
    %v116 = vunpack.c.l.b16 %v103
    %v117 = vpack.c.b16 %v116, %v115
    %v120 = vunpack.c.l.b16 %v104
    %v121 = vunpack.c.l.b16 %v105
    %v122 = vpack.c.b16 %v121, %v120
    %vm124 = vcmask 130048
    %v126 = vsel %vm124, %v117, 0
    %128 = vmatprep.subr.bf16.mxu0 0
    %129 = vmatpush1.bf16.msra.mxu0 %v122
    %130 = vmatprep.subr.bf16.mxu0 0
    %131 = vmatpush1.bf16.msra.mxu0 0
    %132 = vmatprep.subr.bf16.mxu0 0
    %133 = vmatpush1.bf16.msra.mxu0 0
    %134 = vmatprep.subr.bf16.mxu0 0
    %135 = vmatpush1.bf16.msra.mxu0 0
    %136 = vmatprep.subr.bf16.mxu0 0
    %137 = vmatpush1.bf16.msra.mxu0 0
    %138 = vmatprep.subr.bf16.mxu0 0
    %139 = vmatpush1.bf16.msra.mxu0 0
    %140 = vmatprep.subr.bf16.mxu0 0
    %141 = vmatpush1.bf16.msra.mxu0 0
    %142 = vmatprep.subr.bf16.mxu0 0
    %143 = vmatpush1.bf16.msra.mxu0 0
    %144 = vmatprep.subr.bf16.mxu0 0
    %145 = vmatpush1.bf16.msra.mxu0 0
    %146 = vmatprep.subr.bf16.mxu0 0
    %147 = vmatpush1.bf16.msra.mxu0 0
    %148 = vmatprep.subr.bf16.mxu0 0
    %149 = vmatpush1.bf16.msra.mxu0 0
    %150 = vmatprep.subr.bf16.mxu0 0
    %151 = vmatpush1.bf16.msra.mxu0 0
    %152 = vmatprep.subr.bf16.mxu0 0
    %153 = vmatpush1.bf16.msra.mxu0 0
    %154 = vmatprep.subr.bf16.mxu0 0
    %155 = vmatpush1.bf16.msra.mxu0 0
    %156 = vmatprep.subr.bf16.mxu0 0
    %157 = vmatpush1.bf16.msra.mxu0 0
    %158 = vmatprep.subr.bf16.mxu0 0
    %159 = vmatpush1.bf16.msra.mxu0 0
    %160 = vmatprep.mubr.bf16.mxu0 0
    %161 = vmatmul.mubr.bf16.gmra.mrb[0].mxu0 %v126
    %v162 = vpop.f32.mrb[0].mxu0
    %v163 = vadd.f32 %v111, %v162
    %v164 = vpop.f32.mrb[0].mxu0
    %v165 = vpop.f32.mrb[0].mxu0
    %v166 = vadd.f32 %v111, %v165
    %v167 = vpop.f32.mrb[0].mxu0
    %168 = vdwg.mxu0
    %v169 = vmax.f32 %v163, 0.0
    %v170 = vmax.f32 %v166, 0.0
    %v171 = vpack.c.bf16 %v170, %v169
    %v172 = vld [vmem:[#allocation7] sm:$0xf]
    %v173 = vld [vmem:[#allocation7 + $0x4] sm:$0xf]
    %v174 = vld [vmem:[#allocation7 + $0x8] sm:$0xf]
    %v175 = vld [vmem:[#allocation7 + $0xc] sm:$0xf]
    %v176 = vld [vmem:[#allocation7 + $0x10] sm:$0xf]
    %v177 = vld [vmem:[#allocation7 + $0x14] sm:$0xf]
    %v178 = vld [vmem:[#allocation7 + $0x18] sm:$0xf]
    %v179 = vld [vmem:[#allocation7 + $0x1c] sm:$0xf]
    %v180 = vld [vmem:[#allocation7 + $0x20] sm:$0xf]
    %v181 = vld [vmem:[#allocation7 + $0x24] sm:$0xf]
    %v182 = vld [vmem:[#allocation7 + $0x28] sm:$0xf]
    %v183 = vld [vmem:[#allocation7 + $0x2c] sm:$0xf]
    %v184 = vld [vmem:[#allocation7 + $0x30] sm:$0xf]
    %v185 = vld [vmem:[#allocation7 + $0x34] sm:$0xf]
    %v186 = vld [vmem:[#allocation7 + $0x38] sm:$0xf]
    %v187 = vld [vmem:[#allocation7 + $0x3c] sm:$0xf]
    %v188 = vld [vmem:[%s4] sm:$0x1]
    %v190 = vlaneseq
    %v191 = vshrl.u32 %v190, 7
    %v192 = vsub.s32 0, %v191
    %v193 = vrot.slane %v188, %v192
    %v211 = vunpack.c.l.b16 %v172
    %v212 = vunpack.c.l.b16 %v173
    %v213 = vunpack.c.l.b16 %v174
    %v214 = vunpack.c.l.b16 %v175
    %v215 = vunpack.c.l.b16 %v176
    %v216 = vunpack.c.l.b16 %v177
    %v217 = vunpack.c.l.b16 %v178
    %v218 = vunpack.c.l.b16 %v179
    %v219 = vunpack.c.l.b16 %v180
    %v220 = vunpack.c.l.b16 %v181
    %v221 = vunpack.c.l.b16 %v182
    %v222 = vunpack.c.l.b16 %v183
    %v223 = vunpack.c.l.b16 %v184
    %v224 = vunpack.c.l.b16 %v185
    %v225 = vunpack.c.l.b16 %v186
    %v226 = vunpack.c.l.b16 %v187
    %v227 = vpack.c.b16 %v212, %v211
    %v228 = vpack.c.b16 %v214, %v213
    %v229 = vpack.c.b16 %v216, %v215
    %v230 = vpack.c.b16 %v218, %v217
    %v231 = vpack.c.b16 %v220, %v219
    %v232 = vpack.c.b16 %v222, %v221
    %v233 = vpack.c.b16 %v224, %v223
    %v234 = vpack.c.b16 %v226, %v225
    %243 = vmatprep.subr.bf16.mxu0 0
    %244 = vmatpush1.bf16.msra.mxu0 %v227
    %245 = vmatprep.subr.bf16.mxu0 0
    %246 = vmatpush1.bf16.msra.mxu0 %v228
    %247 = vmatprep.subr.bf16.mxu0 0
    %248 = vmatpush1.bf16.msra.mxu0 %v229
    %249 = vmatprep.subr.bf16.mxu0 0
    %250 = vmatpush1.bf16.msra.mxu0 %v230
    %251 = vmatprep.subr.bf16.mxu0 0
    %252 = vmatpush1.bf16.msra.mxu0 %v231
    %253 = vmatprep.subr.bf16.mxu0 0
    %254 = vmatpush1.bf16.msra.mxu0 %v232
    %255 = vmatprep.subr.bf16.mxu0 0
    %256 = vmatpush1.bf16.msra.mxu0 %v233
    %257 = vmatprep.subr.bf16.mxu0 0
    %258 = vmatpush1.bf16.msra.mxu0 %v234
    %259 = vmatprep.subr.bf16.mxu0 0
    %260 = vmatpush1.bf16.msra.mxu0 0
    %261 = vmatprep.subr.bf16.mxu0 0
    %262 = vmatpush1.bf16.msra.mxu0 0
    %263 = vmatprep.subr.bf16.mxu0 0
    %264 = vmatpush1.bf16.msra.mxu0 0
    %265 = vmatprep.subr.bf16.mxu0 0
    %266 = vmatpush1.bf16.msra.mxu0 0
    %267 = vmatprep.subr.bf16.mxu0 0
    %268 = vmatpush1.bf16.msra.mxu0 0
    %269 = vmatprep.subr.bf16.mxu0 0
    %270 = vmatpush1.bf16.msra.mxu0 0
    %271 = vmatprep.subr.bf16.mxu0 0
    %272 = vmatpush1.bf16.msra.mxu0 0
    %273 = vmatprep.subr.bf16.mxu0 0
    %274 = vmatpush1.bf16.msra.mxu0 0
    %275 = vmatprep.mubr.bf16.mxu0 0
    %276 = vmatmul.mubr.bf16.gmra.mrb[0].mxu0 %v171
    %v277 = vpop.f32.mrb[0].mxu0
    %v278 = vadd.f32 %v193, %v277
    %v279 = vpop.f32.mrb[0].mxu0
    %v280 = vpop.f32.mrb[0].mxu0
    %v281 = vadd.f32 %v193, %v280
    %v282 = vpop.f32.mrb[0].mxu0
    %283 = vdwg.mxu0
    %v284 = vmax.f32 %v278, 0.0
    %v285 = vmax.f32 %v281, 0.0
    %v286 = vpack.c.bf16 %v285, %v284
    %v287 = vld [vmem:[#allocation8] sm:$0xf]
    %v288 = vld [vmem:[#allocation8 + $0x4] sm:$0xf]
    %v289 = vld [vmem:[#allocation8 + $0x8] sm:$0xf]
    %v290 = vld [vmem:[#allocation8 + $0xc] sm:$0xf]
    %v291 = vld [vmem:[#allocation8 + $0x10] sm:$0xf]
    %v292 = vld [vmem:[#allocation8 + $0x14] sm:$0xf]
    %v293 = vld [vmem:[#allocation8 + $0x18] sm:$0xf]
    %v294 = vld [vmem:[#allocation8 + $0x1c] sm:$0xf]
    %v295 = vld [vmem:[#allocation8 + $0x20] sm:$0xf]
    %v296 = vld [vmem:[#allocation8 + $0x24] sm:$0xf]
    %v297 = vld [vmem:[#allocation8 + $0x28] sm:$0xf]
    %v298 = vld [vmem:[#allocation8 + $0x2c] sm:$0xf]
    %v299 = vld [vmem:[#allocation8 + $0x30] sm:$0xf]
    %v300 = vld [vmem:[#allocation8 + $0x34] sm:$0xf]
    %v301 = vld [vmem:[#allocation8 + $0x38] sm:$0xf]
    %v302 = vld [vmem:[#allocation8 + $0x3c] sm:$0xf]
    %v303 = vld [vmem:[%s6] sm:$0x1]
    %v305 = vlaneseq
    %v306 = vshrl.u32 %v305, 7
    %v307 = vsub.s32 0, %v306
    %v308 = vrot.slane %v303, %v307
    %v326 = vunpack.c.l.b16 %v287
    %v327 = vunpack.c.l.b16 %v288
    %v328 = vunpack.c.l.b16 %v289
    %v329 = vunpack.c.l.b16 %v290
    %v330 = vunpack.c.l.b16 %v291
    %v331 = vunpack.c.l.b16 %v292
    %v332 = vunpack.c.l.b16 %v293
    %v333 = vunpack.c.l.b16 %v294
    %v334 = vunpack.c.l.b16 %v295
    %v335 = vunpack.c.l.b16 %v296
    %v336 = vunpack.c.l.b16 %v297
    %v337 = vunpack.c.l.b16 %v298
    %v338 = vunpack.c.l.b16 %v299
    %v339 = vunpack.c.l.b16 %v300
    %v340 = vunpack.c.l.b16 %v301
    %v341 = vunpack.c.l.b16 %v302
    %v342 = vpack.c.b16 %v327, %v326
    %v343 = vpack.c.b16 %v329, %v328
    %v344 = vpack.c.b16 %v331, %v330
    %v345 = vpack.c.b16 %v333, %v332
    %v346 = vpack.c.b16 %v335, %v334
    %v347 = vpack.c.b16 %v337, %v336
    %v348 = vpack.c.b16 %v339, %v338
    %v349 = vpack.c.b16 %v341, %v340
    %358 = vmatprep.subr.bf16.mxu0 0
    %359 = vmatpush1.bf16.msra.mxu0 %v342
    %360 = vmatprep.subr.bf16.mxu0 0
    %361 = vmatpush1.bf16.msra.mxu0 %v343
    %362 = vmatprep.subr.bf16.mxu0 0
    %363 = vmatpush1.bf16.msra.mxu0 %v344
    %364 = vmatprep.subr.bf16.mxu0 0
    %365 = vmatpush1.bf16.msra.mxu0 %v345
    %366 = vmatprep.subr.bf16.mxu0 0
    %367 = vmatpush1.bf16.msra.mxu0 %v346
    %368 = vmatprep.subr.bf16.mxu0 0
    %369 = vmatpush1.bf16.msra.mxu0 %v347
    %370 = vmatprep.subr.bf16.mxu0 0
    %371 = vmatpush1.bf16.msra.mxu0 %v348
    %372 = vmatprep.subr.bf16.mxu0 0
    %373 = vmatpush1.bf16.msra.mxu0 %v349
    %374 = vmatprep.subr.bf16.mxu0 0
    %375 = vmatpush1.bf16.msra.mxu0 0
    %376 = vmatprep.subr.bf16.mxu0 0
    %377 = vmatpush1.bf16.msra.mxu0 0
    %378 = vmatprep.subr.bf16.mxu0 0
    %379 = vmatpush1.bf16.msra.mxu0 0
    %380 = vmatprep.subr.bf16.mxu0 0
    %381 = vmatpush1.bf16.msra.mxu0 0
    %382 = vmatprep.subr.bf16.mxu0 0
    %383 = vmatpush1.bf16.msra.mxu0 0
    %384 = vmatprep.subr.bf16.mxu0 0
    %385 = vmatpush1.bf16.msra.mxu0 0
    %386 = vmatprep.subr.bf16.mxu0 0
    %387 = vmatpush1.bf16.msra.mxu0 0
    %388 = vmatprep.subr.bf16.mxu0 0
    %389 = vmatpush1.bf16.msra.mxu0 0
    %390 = vmatprep.mubr.bf16.mxu0 0
    %391 = vmatmul.mubr.bf16.gmra.mrb[0].mxu0 %v286
    %v392 = vpop.f32.mrb[0].mxu0
    %v393 = vadd.f32 %v308, %v392
    %v394 = vpop.f32.mrb[0].mxu0
    %v395 = vpop.f32.mrb[0].mxu0
    %v396 = vadd.f32 %v308, %v395
    %v397 = vpop.f32.mrb[0].mxu0
    %398 = vdwg.mxu0
    %v399 = vmax.f32 %v393, 0.0
    %v400 = vmax.f32 %v396, 0.0
    %v401 = vpack.c.bf16 %v400, %v399
    %v402 = vld [vmem:[#allocation10] sm:$0xf]
    %v403 = vld [vmem:[#allocation10 + $0x4] sm:$0xf]
    %v404 = vld [vmem:[#allocation10 + $0x8] sm:$0xf]
    %v405 = vld [vmem:[#allocation10 + $0xc] sm:$0xf]
    %v406 = vld [vmem:[#allocation10 + $0x10] sm:$0xf]
    %v407 = vld [vmem:[#allocation10 + $0x14] sm:$0xf]
    %v408 = vld [vmem:[#allocation10 + $0x18] sm:$0xf]
    %v409 = vld [vmem:[#allocation10 + $0x1c] sm:$0xf]
    %v410 = vld [vmem:[#allocation10 + $0x20] sm:$0xf]
    %v411 = vld [vmem:[#allocation10 + $0x24] sm:$0xf]
    %v412 = vld [vmem:[#allocation10 + $0x28] sm:$0xf]
    %v413 = vld [vmem:[#allocation10 + $0x2c] sm:$0xf]
    %v414 = vld [vmem:[#allocation10 + $0x30] sm:$0xf]
    %v415 = vld [vmem:[#allocation10 + $0x34] sm:$0xf]
    %v416 = vld [vmem:[#allocation10 + $0x38] sm:$0xf]
    %v417 = vld [vmem:[#allocation10 + $0x3c] sm:$0xf]
    %v418 = vld [vmem:[%s8] sm:$0x1]
    %v420 = vlaneseq
    %v421 = vshrl.u32 %v420, 7
    %v422 = vsub.s32 0, %v421
    %v423 = vrot.slane %v418, %v422
    %v441 = vunpack.c.l.b16 %v402
    %v442 = vunpack.c.l.b16 %v403
    %v443 = vunpack.c.l.b16 %v404
    %v444 = vunpack.c.l.b16 %v405
    %v445 = vunpack.c.l.b16 %v406
    %v446 = vunpack.c.l.b16 %v407
    %v447 = vunpack.c.l.b16 %v408
    %v448 = vunpack.c.l.b16 %v409
    %v449 = vunpack.c.l.b16 %v410
    %v450 = vunpack.c.l.b16 %v411
    %v451 = vunpack.c.l.b16 %v412
    %v452 = vunpack.c.l.b16 %v413
    %v453 = vunpack.c.l.b16 %v414
    %v454 = vunpack.c.l.b16 %v415
    %v455 = vunpack.c.l.b16 %v416
    %v456 = vunpack.c.l.b16 %v417
    %v457 = vpack.c.b16 %v442, %v441
    %v458 = vpack.c.b16 %v444, %v443
    %v459 = vpack.c.b16 %v446, %v445
    %v460 = vpack.c.b16 %v448, %v447
    %v461 = vpack.c.b16 %v450, %v449
    %v462 = vpack.c.b16 %v452, %v451
    %v463 = vpack.c.b16 %v454, %v453
    %v464 = vpack.c.b16 %v456, %v455
    %473 = vmatprep.subr.bf16.mxu0 0
    %474 = vmatpush1.bf16.msra.mxu0 %v457
    %475 = vmatprep.subr.bf16.mxu0 0
    %476 = vmatpush1.bf16.msra.mxu0 %v458
    %477 = vmatprep.subr.bf16.mxu0 0
    %478 = vmatpush1.bf16.msra.mxu0 %v459
    %479 = vmatprep.subr.bf16.mxu0 0
    %480 = vmatpush1.bf16.msra.mxu0 %v460
    %481 = vmatprep.subr.bf16.mxu0 0
    %482 = vmatpush1.bf16.msra.mxu0 %v461
    %483 = vmatprep.subr.bf16.mxu0 0
    %484 = vmatpush1.bf16.msra.mxu0 %v462
    %485 = vmatprep.subr.bf16.mxu0 0
    %486 = vmatpush1.bf16.msra.mxu0 %v463
    %487 = vmatprep.subr.bf16.mxu0 0
    %488 = vmatpush1.bf16.msra.mxu0 %v464
    %489 = vmatprep.subr.bf16.mxu0 0
    %490 = vmatpush1.bf16.msra.mxu0 0
    %491 = vmatprep.subr.bf16.mxu0 0
    %492 = vmatpush1.bf16.msra.mxu0 0
    %493 = vmatprep.subr.bf16.mxu0 0
    %494 = vmatpush1.bf16.msra.mxu0 0
    %495 = vmatprep.subr.bf16.mxu0 0
    %496 = vmatpush1.bf16.msra.mxu0 0
    %497 = vmatprep.subr.bf16.mxu0 0
    %498 = vmatpush1.bf16.msra.mxu0 0
    %499 = vmatprep.subr.bf16.mxu0 0
    %500 = vmatpush1.bf16.msra.mxu0 0
    %501 = vmatprep.subr.bf16.mxu0 0
    %502 = vmatpush1.bf16.msra.mxu0 0
    %503 = vmatprep.subr.bf16.mxu0 0
    %504 = vmatpush1.bf16.msra.mxu0 0
    %505 = vmatprep.mubr.bf16.mxu0 0
    %506 = vmatmul.mubr.bf16.gmra.mrb[0].mxu0 %v401
    %v507 = vpop.f32.mrb[0].mxu0
    %v508 = vadd.f32 %v423, %v507
    %v509 = vpop.f32.mrb[0].mxu0
    %v510 = vpop.f32.mrb[0].mxu0
    %v511 = vadd.f32 %v423, %v510
    %v512 = vpop.f32.mrb[0].mxu0
    %513 = vdwg.mxu0
    %v514 = vtanh.pop %v508
    %v515 = vtanh.pop %v511
    %v516 = vpack.c.bf16 %v515, %v514
    %v518 = vunpack.c.l.b16 %v516
    %v519 = vunpack.c.h.b16 %v516
    %v520 = vpack.c.b16 %v518, %v518
    %v521 = vpack.c.b16 %v519, %v519
    %524 = vst [vmem:[#allocation11] sm:$0xf] %v520
    %525 = vst [vmem:[#allocation11 + $0x4] sm:$0xf] %v521
    // Predicated region
    $region58: #{tpu_custom_call.1} parent=1 // pred_check
      _
    $region59: #{tpu_custom_call.1} parent=1 // pred_check_branch
      %527 = sbr.rel (0) target = $region61
    $region60: #{tpu_custom_call.1} parent=1 // pred_region
      %s529 = ssub.s32 128, 128
      %530 = vsyncadd [#allocation4], %s529
      %s531 = sshll.u32 [#allocation11], 4
      %s532 = int_to_ptr.vmem [resolvable:$true] %s531
      %537 = dma.vmem_to_hbm [thread:$0]  %s532, 128, %s9, [#allocation4], 64, 64, 4
    $region61: #{tpu_custom_call.1} parent=1 // pred_fallthru
      _
    // Predicated region
    $region62: #{tpu_custom_call.1} parent=1 // pred_check
      _
    $region63: #{tpu_custom_call.1} parent=1 // pred_check_branch
      %539 = sbr.rel (0) target = $region65
    $region64: #{tpu_custom_call.1} parent=1 // pred_region
      %540 = dma.done [#allocation4], 128
    $region65: #{tpu_custom_call.1} parent=1 // pred_fallthru
      _
    %541 = vsyncpa [#allocation3], 1
    %542 = vsyncpa [#allocation6], 1
    %543 = vsyncpa [#allocation9], 1
    %544 = vsyncpa [#allocation4], 1

</llo_original>
